<compile_context>
chip_gen: v7x
topology: tpu7x:2x2x1
jax: 0.10.0
libtpu: 0.0.40
codegen_flags: <defaults>
</compile_context>

<pallas_src>
import numpy as np
import jax
import jax.numpy as jnp
from jax.experimental import pallas as pl
from jax.experimental.pallas import tpu as pltpu


def _assemble_kernel(row_ref, col_ref, out_ref):
    """Write one (Ht, W, model_dim) output tile: [row_embed[h] | col_embed[w]]."""
    ht, w, feat = out_ref.shape
    d2 = feat // 2
    # Rows of the (VMEM-resident) row table covered by this tile.
    start = pl.multiple_of(pl.program_id(0) * ht, ht)
    rows = row_ref[pl.ds(start, ht), :]          # (Ht, D2) f32
    cols = col_ref[...]                          # (W,  D2) f32
    # First half of the feature axis: row embedding, broadcast across W.
    out_ref[:, :, :d2] = jnp.broadcast_to(
        rows[:, None, :], (ht, w, d2)).astype(out_ref.dtype)
    # Second half: column embedding, broadcast across the Ht rows of this tile.
    out_ref[:, :, d2:] = jnp.broadcast_to(
        cols[None, :, :], (ht, w, d2)).astype(out_ref.dtype)


def _pick_h_tile(height, width, feat, itemsize, target_bytes=8 << 20):
    """Largest divisor of `height` whose (Ht, W, feat) tile is <= target_bytes."""
    row_bytes = width * feat * itemsize
    max_rows = max(1, target_bytes // row_bytes)
    if height <= max_rows:
        return height
    best = 1
    for d in range(1, height + 1):
        if height % d == 0 and d <= max_rows:
            best = d
    return best


def sincos_2d_pos_embed(model_dim, height, width, out_dtype=jnp.float32, h_tile=None):
    """Returns pos of shape (height*width, 4*(model_dim//4)), matching the torch module."""
    d4 = model_dim // 4
    d2 = 2 * d4
    feat = 2 * d2  # == model_dim when model_dim % 4 == 0

    # ---- module "constants" (PyTorch __init__): tiny f32 tables, built once ----
    # np/jnp.linspace includes the endpoint, matching torch's linspace.
    freq = jnp.linspace(0.0, 2.0 * np.pi, d4, dtype=jnp.float32)       # (D4,)
    h_idx = jnp.arange(height, dtype=jnp.float32)[:, None]
    w_idx = jnp.arange(width, dtype=jnp.float32)[:, None]
    row_embed = jnp.concatenate(
        [jnp.sin(h_idx * freq), jnp.cos(h_idx * freq)], axis=-1)       # (H, D2)
    col_embed = jnp.concatenate(
        [jnp.sin(w_idx * freq), jnp.cos(w_idx * freq)], axis=-1)       # (W, D2)

    # ---- forward(): Pallas kernel, tiled over the output only ----
    itemsize = jnp.dtype(out_dtype).itemsize
    ht = h_tile if h_tile is not None else _pick_h_tile(height, width, feat, itemsize)
    assert height % ht == 0, "h_tile must divide height"
    grid = (height // ht,)

    out3d = pl.pallas_call(
        _assemble_kernel,
        out_shape=jax.ShapeDtypeStruct((height, width, feat), out_dtype),
        grid_spec=pltpu.PrefetchScalarGridSpec(
            num_scalar_prefetch=0,
            grid=grid,
            in_specs=[
                # Tables are tiny -> keep them fully VMEM-resident every step
                # (block == full array, constant index_map).
                pl.BlockSpec((height, d2), lambda i: (0, 0)),
                pl.BlockSpec((width, d2), lambda i: (0, 0)),
            ],
            out_specs=pl.BlockSpec((ht, width, feat), lambda i: (i, 0, 0)),
        ),
        compiler_params=pltpu.CompilerParams(
            # Single, independent output axis: lets v7x shard across its 2 TCs.
            dimension_semantics=("parallel",),
        ),
    )(row_embed, col_embed)

    # Collapse (H, W, feat) -> (H*W, feat): leading-dim collapse, metadata-only.
    return out3d.reshape(height * width, feat)


def _reference(model_dim, height, width):
    """Pure numpy mirror of the PyTorch module."""
    d4 = model_dim // 4
    freq = np.linspace(0.0, 2.0 * np.pi, d4).astype(np.float32)
    h_idx = np.arange(height, dtype=np.float32)[:, None]
    w_idx = np.arange(width, dtype=np.float32)[:, None]
    row = np.concatenate([np.sin(h_idx * freq), np.cos(h_idx * freq)], axis=-1)
    col = np.concatenate([np.sin(w_idx * freq), np.cos(w_idx * freq)], axis=-1)
    pos = np.concatenate(
        [
            np.broadcast_to(row[:, None, :], (height, width, row.shape[-1])),
            np.broadcast_to(col[None, :, :], (height, width, col.shape[-1])),
        ],
        axis=-1,
    )
    return pos.reshape(height * width, -1)


if __name__ == "__main__":
    # forward() takes no tensor inputs; the PRNG key is created only so the
    # harness is deterministic/explicit, it is unused by the module itself.
    _ = jax.random.PRNGKey(0)

    configs = [
        dict(model_dim=32, height=8, width=16, h_tile=None),  # single-tile grid
        dict(model_dim=64, height=16, width=8, h_tile=4),     # multi-step grid (grid=(4,))
    ]
    for cfg in configs:
        pos = sincos_2d_pos_embed(
            cfg["model_dim"], cfg["height"], cfg["width"], h_tile=cfg["h_tile"]
        )
        pos = jax.block_until_ready(pos)
        ref = _reference(cfg["model_dim"], cfg["height"], cfg["width"])
        assert pos.shape == ref.shape, (pos.shape, ref.shape)
        np.testing.assert_allclose(np.asarray(pos), ref, atol=1e-4, rtol=1e-4)

    print("KERNEL_OK")
</pallas_src>

<mosaic_0001>
module attributes {stable_mosaic.version = 11 : i64} {
  func.func @_assemble_kernel(%arg0: i32, %arg1: memref<8x16xf32, #tpu.memory_space<vmem>>, %arg2: memref<16x16xf32, #tpu.memory_space<vmem>>, %arg3: memref<8x16x32xf32, #tpu.memory_space<vmem>>) attributes {dimension_semantics = [#tpu.dimension_semantics<parallel>], iteration_bounds = array<i64: 1>, scalar_prefetch = 0 : i64, scratch_operands = 0 : i64, tpu.core_type = #tpu.core_type<tc>, window_params = [{pipeline_mode = #tpu.pipeline_mode<synchronous>, transform_indices = @transform_0, window_bounds = array<i64: 8, 16>}, {pipeline_mode = #tpu.pipeline_mode<synchronous>, transform_indices = @transform_1, window_bounds = array<i64: 16, 16>}, {transform_indices = @transform_2, window_bounds = array<i64: 8, 16, 32>}]} {
    %c8_i32 = arith.constant 8 : i32
    %0 = arith.muli %arg0, %c8_i32 : i32
    %1 = tpu.assume_multiple %0, 8 : i32
    %2 = arith.index_cast %1 : i32 to index
    %c0 = arith.constant 0 : index
    %3 = vector.load %arg1[%2, %c0] : memref<8x16xf32, #tpu.memory_space<vmem>>, vector<8x16xf32>
    %c0_0 = arith.constant 0 : index
    %c0_1 = arith.constant 0 : index
    %4 = vector.load %arg2[%c0_0, %c0_1] : memref<16x16xf32, #tpu.memory_space<vmem>>, vector<16x16xf32>
    %5 = vector.shape_cast %3 : vector<8x16xf32> to vector<8x1x16xf32>
    %6 = vector.shape_cast %5 : vector<8x1x16xf32> to vector<8x1x16xf32>
    %7 = vector.broadcast %6 : vector<8x1x16xf32> to vector<8x16x16xf32>
    %c0_2 = arith.constant 0 : index
    %c0_3 = arith.constant 0 : index
    %c0_4 = arith.constant 0 : index
    %8 = vector.load %arg3[%c0_2, %c0_3, %c0_4] : memref<8x16x32xf32, #tpu.memory_space<vmem>>, vector<8x16x16xf32>
    tpu.vector_store %arg3[%c0_2, %c0_3, %c0_4], %7 {strides = array<i32>} : memref<8x16x32xf32, #tpu.memory_space<vmem>>, vector<8x16x16xf32>,
    %9 = vector.shape_cast %4 : vector<16x16xf32> to vector<1x16x16xf32>
    %10 = vector.shape_cast %9 : vector<1x16x16xf32> to vector<1x16x16xf32>
    %11 = vector.broadcast %10 : vector<1x16x16xf32> to vector<8x16x16xf32>
    %c0_5 = arith.constant 0 : index
    %c0_6 = arith.constant 0 : index
    %c16 = arith.constant 16 : index
    %12 = vector.load %arg3[%c0_5, %c0_6, %c16] : memref<8x16x32xf32, #tpu.memory_space<vmem>>, vector<8x16x16xf32>
    tpu.vector_store %arg3[%c0_5, %c0_6, %c16], %11 {strides = array<i32>} : memref<8x16x32xf32, #tpu.memory_space<vmem>>, vector<8x16x16xf32>,
    return
  }
  func.func @transform_0(%arg0: i32) -> (i32, i32) {
    %c0_i32 = arith.constant 0 : i32
    %c0_i32_0 = arith.constant 0 : i32
    %c0_i32_1 = arith.constant 0 : i32
    return %c0_i32, %c0_i32_0 : i32, i32
  }
  func.func @transform_1(%arg0: i32) -> (i32, i32) {
    %c0_i32 = arith.constant 0 : i32
    %c0_i32_0 = arith.constant 0 : i32
    %c0_i32_1 = arith.constant 0 : i32
    return %c0_i32, %c0_i32_0 : i32, i32
  }
  func.func @transform_2(%arg0: i32) -> (i32, i32, i32) {
    %c0_i32 = arith.constant 0 : i32
    %c0_i32_0 = arith.constant 0 : i32
    %c0_i32_1 = arith.constant 0 : i32
    return %arg0, %c0_i32, %c0_i32_0 : i32, i32, i32
  }
}

</mosaic_0001>

<llo_original>
// kernel: tpu_custom_call.1
$region0: #{tpu_custom_call.1}
  #allocation0 [shape = 'u32[]', space=smem, size = 0x4, offset = 0x4, fixed_abs, tag = 'smem constant byte address 0x4 - core index']
  #allocation1 [shape = 'u32[144,128]{1,0:T(1,128)}', space=vmem, size = 0x12000, scoped, tag = 'internal scratch']
  %s0 = inlined_call_operand.hbm [shape: f32[8,16], index: 0, kind: input, shape index: {}]
  %s1 = inlined_call_operand.hbm [shape: f32[16,16], index: 1, kind: input, shape index: {}]
  %s2 = inlined_call_operand.hbm [shape: f32[8,16,32], index: 2, kind: output, shape index: {}]
  %s3 = sld [smem:[#allocation0]]
  $region26: #{tpu_custom_call.1} parent=0
    _
  %s5 = ssub.s32 1, %s3
  %s6 = scalar_select 0, %s5, %s3
  $region1: #{tpu_custom_call.1} parent=0
    #allocation2 [shape = 'u8[4096]{0}', space=vmem, size = 0x1000, scoped, tag = 'input window, operand 0, single buffered']
    #allocation3 [shape = 's32[1]{0}', space=sflag, size = 0x4, scoped, tag = 'scoped memory for tpu_custom_call.1']
    #allocation4 [shape = 's32[1]{0}', space=sflag, size = 0x4, scoped, tag = 'scoped memory for tpu_custom_call.1']
    #allocation5 [shape = 'u8[8192]{0}', space=vmem, size = 0x2000, scoped, tag = 'input window, operand 1, single buffered']
    #allocation6 [shape = 's32[1]{0}', space=sflag, size = 0x4, scoped, tag = 'scoped memory for tpu_custom_call.1']
    #allocation7 [shape = 'u8[65536]{0}', space=vmem, size = 0x10000, scoped, tag = 'output window, operand 0, single buffered']
    %7 = vsyncpa [#allocation3], 0
    %8 = vsyncpa [#allocation6], 0
    %9 = vsyncpa [#allocation4], 0
    // Predicated region
    $region2: #{tpu_custom_call.1} parent=1 // pred_check
      _
    $region3: #{tpu_custom_call.1} parent=1 // pred_check_branch
      %11 = sbr.rel (0) target = $region5
    $region4: #{tpu_custom_call.1} parent=1 // pred_region
      %s13 = ssub.s32 128, 128
      %14 = vsyncadd [#allocation3], %s13
      %s16 = sshll.u32 [#allocation2], 4
      %s17 = int_to_ptr.vmem [resolvable:$true] %s16
      %19 = dma.hbm_to_vmem [thread:$0]  %s0, 128, %s17, [#allocation3]
    $region5: #{tpu_custom_call.1} parent=1 // pred_fallthru
      _
    // Predicated region
    $region6: #{tpu_custom_call.1} parent=1 // pred_check
      _
    $region7: #{tpu_custom_call.1} parent=1 // pred_check_branch
      %21 = sbr.rel (0) target = $region9
    $region8: #{tpu_custom_call.1} parent=1 // pred_region
      %s23 = ssub.s32 256, 256
      %24 = vsyncadd [#allocation6], %s23
      %s25 = sshll.u32 [#allocation5], 4
      %s26 = int_to_ptr.vmem [resolvable:$true] %s25
      %31 = dma.hbm_to_vmem [thread:$0]  %s1, 256, %s26, [#allocation6], 128, 128, 8
    $region9: #{tpu_custom_call.1} parent=1 // pred_fallthru
      _
    // Predicated region
    $region10: #{tpu_custom_call.1} parent=1 // pred_check
      _
    $region11: #{tpu_custom_call.1} parent=1 // pred_check_branch
      %33 = sbr.rel (0) target = $region13
    $region12: #{tpu_custom_call.1} parent=1 // pred_region
      %34 = dma.done [#allocation3], 128
    $region13: #{tpu_custom_call.1} parent=1 // pred_fallthru
      _
    // Predicated region
    $region14: #{tpu_custom_call.1} parent=1 // pred_check
      _
    $region15: #{tpu_custom_call.1} parent=1 // pred_check_branch
      %36 = sbr.rel (0) target = $region17
    $region16: #{tpu_custom_call.1} parent=1 // pred_region
      %37 = dma.done [#allocation6], 256
    $region17: #{tpu_custom_call.1} parent=1 // pred_fallthru
      _
    %s38 = smul.u32 0, 8
    %s39 = scalar_lea.vmem [#allocation2], %s38
    %v40 = vld [vmem:[%s39] sm:$0xff]
    %v41 = vld [vmem:[#allocation5] sm:$0xff]
    %v42 = vld [vmem:[#allocation5 + $0x8] sm:$0xff]
    %v44 = vcombine.high %v40, %v40
    %v46 = vunpack.c.l.s4 1966171168
    %v47 = vunpack.c.0.s8 %v46
    %v48 = vlaneseq
    %v49 = vshrl.u32 %v48, 7
    %v50 = vsub.s32 %v47, %v49
    %v51 = vrot.slane %v40, %v50
    %v53 = vunpack.c.l.s4 1966171168
    %v54 = vunpack.c.0.s8 %v53
    %v55 = vlaneseq
    %v56 = vshrl.u32 %v55, 7
    %v57 = vsub.s32 %v54, %v56
    %v58 = vrot.slane %v44, %v57
    %v59 = vcombine.high %v51, %v51
    %v60 = vcombine.high %v58, %v58
    %v62 = vunpack.c.l.s4 1966171168
    %v63 = vunpack.c.0.s8 %v62
    %v64 = vlaneseq
    %v65 = vshrl.u32 %v64, 7
    %v66 = vsub.s32 %v63, %v65
    %v67 = vrot.slane %v51, %v66
    %v69 = vunpack.c.l.s4 1966171168
    %v70 = vunpack.c.0.s8 %v69
    %v71 = vlaneseq
    %v72 = vshrl.u32 %v71, 7
    %v73 = vsub.s32 %v70, %v72
    %v74 = vrot.slane %v58, %v73
    %v76 = vunpack.c.l.s4 1966171168
    %v77 = vunpack.c.0.s8 %v76
    %v78 = vlaneseq
    %v79 = vshrl.u32 %v78, 7
    %v80 = vsub.s32 %v77, %v79
    %v81 = vrot.slane %v59, %v80
    %v83 = vunpack.c.l.s4 1966171168
    %v84 = vunpack.c.0.s8 %v83
    %v85 = vlaneseq
    %v86 = vshrl.u32 %v85, 7
    %v87 = vsub.s32 %v84, %v86
    %v88 = vrot.slane %v60, %v87
    %v89 = vcombine.high %v67, %v67
    %v90 = vcombine.high %v74, %v74
    %v91 = vcombine.high %v81, %v81
    %v92 = vcombine.high %v88, %v88
    %v93 = vlaneseq
    %v94 = vshrl.u32 %v93, 7
    %v95 = vsub.s32 0, %v94
    %v96 = vrot.slane %v67, %v95
    %v97 = vlaneseq
    %v98 = vshrl.u32 %v97, 7
    %v99 = vsub.s32 0, %v98
    %v100 = vrot.slane %v81, %v99
    %v101 = vlaneseq
    %v102 = vshrl.u32 %v101, 7
    %v103 = vsub.s32 0, %v102
    %v104 = vrot.slane %v89, %v103
    %v105 = vlaneseq
    %v106 = vshrl.u32 %v105, 7
    %v107 = vsub.s32 0, %v106
    %v108 = vrot.slane %v91, %v107
    %v109 = vlaneseq
    %v110 = vshrl.u32 %v109, 7
    %v111 = vsub.s32 0, %v110
    %v112 = vrot.slane %v74, %v111
    %v113 = vlaneseq
    %v114 = vshrl.u32 %v113, 7
    %v115 = vsub.s32 0, %v114
    %v116 = vrot.slane %v88, %v115
    %v117 = vlaneseq
    %v118 = vshrl.u32 %v117, 7
    %v119 = vsub.s32 0, %v118
    %v120 = vrot.slane %v90, %v119
    %v121 = vlaneseq
    %v122 = vshrl.u32 %v121, 7
    %v123 = vsub.s32 0, %v122
    %v124 = vrot.slane %v92, %v123
    %vm133 = vcmask 130048
    %134 = vst.msk [vmem:[#allocation7] sm:$0xff] %vm133, %v96
    %135 = vst.msk [vmem:[#allocation7 + $0x8] sm:$0xff] %vm133, %v96
    %136 = vst.msk [vmem:[#allocation7 + $0x10] sm:$0xff] %vm133, %v100
    %137 = vst.msk [vmem:[#allocation7 + $0x18] sm:$0xff] %vm133, %v100
    %138 = vst.msk [vmem:[#allocation7 + $0x20] sm:$0xff] %vm133, %v104
    %139 = vst.msk [vmem:[#allocation7 + $0x28] sm:$0xff] %vm133, %v104
    %140 = vst.msk [vmem:[#allocation7 + $0x30] sm:$0xff] %vm133, %v108
    %141 = vst.msk [vmem:[#allocation7 + $0x38] sm:$0xff] %vm133, %v108
    %142 = vst.msk [vmem:[#allocation7 + $0x40] sm:$0xff] %vm133, %v112
    %143 = vst.msk [vmem:[#allocation7 + $0x48] sm:$0xff] %vm133, %v112
    %144 = vst.msk [vmem:[#allocation7 + $0x50] sm:$0xff] %vm133, %v116
    %145 = vst.msk [vmem:[#allocation7 + $0x58] sm:$0xff] %vm133, %v116
    %146 = vst.msk [vmem:[#allocation7 + $0x60] sm:$0xff] %vm133, %v120
    %147 = vst.msk [vmem:[#allocation7 + $0x68] sm:$0xff] %vm133, %v120
    %148 = vst.msk [vmem:[#allocation7 + $0x70] sm:$0xff] %vm133, %v124
    %149 = vst.msk [vmem:[#allocation7 + $0x78] sm:$0xff] %vm133, %v124
    %152 = vrot.lane.b32.xlu0 %v41, 16
    %v153 = vpop.permute.xlu0 %152
    %154 = vrot.lane.b32.xlu0 %v42, 16
    %v155 = vpop.permute.xlu0 %154
    %vm158 = vcmask 261248
    %159 = vst.msk [vmem:[#allocation7] sm:$0xff] %vm158, %v153
    %160 = vst.msk [vmem:[#allocation7 + $0x8] sm:$0xff] %vm158, %v155
    %161 = vst.msk [vmem:[#allocation7 + $0x10] sm:$0xff] %vm158, %v153
    %162 = vst.msk [vmem:[#allocation7 + $0x18] sm:$0xff] %vm158, %v155
    %163 = vst.msk [vmem:[#allocation7 + $0x20] sm:$0xff] %vm158, %v153
    %164 = vst.msk [vmem:[#allocation7 + $0x28] sm:$0xff] %vm158, %v155
    %165 = vst.msk [vmem:[#allocation7 + $0x30] sm:$0xff] %vm158, %v153
    %166 = vst.msk [vmem:[#allocation7 + $0x38] sm:$0xff] %vm158, %v155
    %167 = vst.msk [vmem:[#allocation7 + $0x40] sm:$0xff] %vm158, %v153
    %168 = vst.msk [vmem:[#allocation7 + $0x48] sm:$0xff] %vm158, %v155
    %169 = vst.msk [vmem:[#allocation7 + $0x50] sm:$0xff] %vm158, %v153
    %170 = vst.msk [vmem:[#allocation7 + $0x58] sm:$0xff] %vm158, %v155
    %171 = vst.msk [vmem:[#allocation7 + $0x60] sm:$0xff] %vm158, %v153
    %172 = vst.msk [vmem:[#allocation7 + $0x68] sm:$0xff] %vm158, %v155
    %173 = vst.msk [vmem:[#allocation7 + $0x70] sm:$0xff] %vm158, %v153
    %174 = vst.msk [vmem:[#allocation7 + $0x78] sm:$0xff] %vm158, %v155
    // Predicated region
    $region18: #{tpu_custom_call.1} parent=1 // pred_check
      _
    $region19: #{tpu_custom_call.1} parent=1 // pred_check_branch
      %176 = sbr.rel (0) target = $region21
    $region20: #{tpu_custom_call.1} parent=1 // pred_region
      %s178 = ssub.s32 2048, 2048
      %179 = vsyncadd [#allocation4], %s178
      %s180 = sshll.u32 [#allocation7], 4
      %s181 = int_to_ptr.vmem [resolvable:$true] %s180
      %186 = dma.vmem_to_hbm [thread:$0]  %s181, 2048, %s2, [#allocation4], 128, 128, 8
    $region21: #{tpu_custom_call.1} parent=1 // pred_fallthru
      _
    // Predicated region
    $region22: #{tpu_custom_call.1} parent=1 // pred_check
      _
    $region23: #{tpu_custom_call.1} parent=1 // pred_check_branch
      %188 = sbr.rel (0) target = $region25
    $region24: #{tpu_custom_call.1} parent=1 // pred_region
      %189 = dma.done [#allocation4], 2048
    $region25: #{tpu_custom_call.1} parent=1 // pred_fallthru
      _
    %190 = vsyncpa [#allocation3], 1
    %191 = vsyncpa [#allocation6], 1
    %192 = vsyncpa [#allocation4], 1

</llo_original>
